<compile_context>
chip_gen: v5e
topology: v5e:2x2
jax: 0.10.0
libtpu: 0.0.40
codegen_flags: <defaults>
</compile_context>

<pallas_src>
import jax
import jax.numpy as jnp
from jax.experimental import pallas as pl
from jax.experimental.pallas import tpu as pltpu


def _rish_kernel(x):
    """Mish-style activation, single-exp stable form (in-kernel).

    With n = exp(-|x|) in (0, 1]:
      x >= 0: tanh(softplus(x)) = (1 + 2n) / (1 + 2n + 2n^2)
      x <  0: tanh(softplus(x)) = (n^2 + 2n) / (n^2 + 2n + 2)
    One EUP exp + one approx reciprocal instead of exp + log1p + tanh.
    """
    n = jnp.exp(-jnp.abs(x))
    nn = n * n
    two_n = 2.0 * n
    num = jnp.where(x >= 0, 1.0 + two_n, nn + two_n)
    den = jnp.where(x >= 0, 1.0 + two_n + 2.0 * nn, nn + two_n + 2.0)
    return x * num * pl.reciprocal(den, approx=True)


def _rish_exact(x):
    # Reference activation (exact): x * tanh(softplus(x)).
    return x * jnp.tanh(jnp.logaddexp(x, 0.0))


def value_mlp_kernel(x_ref, w1_ref, b1_ref, w2_ref, b2_ref, w3_ref, b3_ref, o_ref):
    # x_ref: (TB, S) f32 ; w1/w2: bf16 ; b1/b2/w3/b3: f32 ; o_ref: (TB, 1) f32
    x = x_ref[...].astype(w1_ref.dtype)  # bf16 MXU inputs, f32 accumulation

    h = jnp.dot(x, w1_ref[...], preferred_element_type=jnp.float32) + b1_ref[...]
    h = _rish_kernel(h)

    h = jnp.dot(h.astype(w2_ref.dtype), w2_ref[...],
                preferred_element_type=jnp.float32) + b2_ref[...]
    h = _rish_kernel(h)

    # Value head: (TB, H) * (1, H) summed over lanes -> (TB, 1).
    # Avoids writing a lane-padded (TB, 128) block to HBM just to keep column 0.
    v = jnp.sum(h * w3_ref[...], axis=-1, keepdims=True) + b3_ref[...]
    o_ref[...] = v.astype(o_ref.dtype)


def value_forward(x, params, *, block_b=1024):
    """x: (B, state_dim) f32 -> (B, 1) f32."""
    w1, b1, w2, b2, w3, b3 = params
    B, S = x.shape
    H = w1.shape[1]

    # Batch tile: multiple of 128; pad the batch up to a whole number of tiles.
    tb = min(block_b, ((B + 127) // 128) * 128)
    Bp = ((B + tb - 1) // tb) * tb
    if Bp != B:
        x = jnp.pad(x, ((0, Bp - B), (0, 0)))

    const2 = lambda i: (0, 0)  # weights/biases: same block every step -> stay VMEM-resident

    out = pl.pallas_call(
        value_mlp_kernel,
        out_shape=jax.ShapeDtypeStruct((Bp, 1), jnp.float32),
        grid_spec=pltpu.PrefetchScalarGridSpec(
            num_scalar_prefetch=0,
            grid=(Bp // tb,),
            in_specs=[
                pl.BlockSpec((tb, S), lambda i: (i, 0)),  # x: tiled over batch
                pl.BlockSpec((S, H), const2),             # w1 (bf16, resident)
                pl.BlockSpec((1, H), const2),             # b1
                pl.BlockSpec((H, H), const2),             # w2 (bf16, resident)
                pl.BlockSpec((1, H), const2),             # b2
                pl.BlockSpec((1, H), const2),             # w3 row vector
                pl.BlockSpec((1, 1), const2),             # b3 scalar
            ],
            out_specs=pl.BlockSpec((tb, 1), lambda i: (i, 0)),
        ),
        compiler_params=pltpu.CompilerParams(
            dimension_semantics=("parallel",),            # shard batch steps across TCs (v7x)
        ),
    )(x, w1, b1, w2, b2, w3, b3)

    return out[:B]


def init_params(key, state_dim, hidden_dim):
    """Matches the torch init: W ~ U(-3e-4, 3e-4), b = 0.
    Weights stored as (in, out); w1/w2 kept in bf16 for single-pass MXU matmuls."""
    k1, k2, k3 = jax.random.split(key, 3)
    lim = 3e-4
    w1 = jax.random.uniform(k1, (state_dim, hidden_dim), jnp.float32, -lim, lim)
    w2 = jax.random.uniform(k2, (hidden_dim, hidden_dim), jnp.float32, -lim, lim)
    w3 = jax.random.uniform(k3, (hidden_dim, 1), jnp.float32, -lim, lim)
    return (
        w1.astype(jnp.bfloat16),
        jnp.zeros((1, hidden_dim), jnp.float32),
        w2.astype(jnp.bfloat16),
        jnp.zeros((1, hidden_dim), jnp.float32),
        w3.T,                                    # (1, hidden) f32 row vector
        jnp.zeros((1, 1), jnp.float32),
    )


def reference_forward(x, params):
    """Plain-JAX reference with the same bf16 matmul inputs / f32 accumulation and
    the exact Mish activation (so the only kernel deltas are the approx reciprocal
    and accumulation order)."""
    w1, b1, w2, b2, w3, b3 = params
    h = _rish_exact(
        jnp.dot(x.astype(w1.dtype), w1, preferred_element_type=jnp.float32) + b1)
    h = _rish_exact(
        jnp.dot(h.astype(w2.dtype), w2, preferred_element_type=jnp.float32) + b2)
    return jnp.sum(h * w3, axis=-1, keepdims=True) + b3


if __name__ == "__main__":
    BATCH = 400        # not a multiple of the tile -> exercises batch padding
    STATE_DIM = 16
    HIDDEN = 128       # default hidden_dim of the torch module

    key = jax.random.PRNGKey(0)
    kx, kp = jax.random.split(key)
    x = jax.random.normal(kx, (BATCH, STATE_DIM), jnp.float32)
    params = init_params(kp, STATE_DIM, HIDDEN)

    out = value_forward(x, params, block_b=128)   # grid=(4,) over the padded batch
    out = jax.block_until_ready(out)
    assert out.shape == (BATCH, 1), out.shape

    ref = reference_forward(x, params)
    # Tolerance covers the approx reciprocal in the in-kernel activation and
    # MXU accumulation-order differences (outputs are O(1e-9) with these tiny weights).
    assert jnp.allclose(out, ref, rtol=2e-2, atol=1e-11), float(
        jnp.max(jnp.abs(out - ref)))

    print("KERNEL_OK")
</pallas_src>

<mosaic_0001>
module attributes {stable_mosaic.version = 11 : i64} {
  func.func @value_mlp_kernel(%arg0: i32, %arg1: memref<128x16xf32, #tpu.memory_space<vmem>>, %arg2: memref<16x128xbf16, #tpu.memory_space<vmem>>, %arg3: memref<1x128xf32, #tpu.memory_space<vmem>>, %arg4: memref<128x128xbf16, #tpu.memory_space<vmem>>, %arg5: memref<1x128xf32, #tpu.memory_space<vmem>>, %arg6: memref<1x128xf32, #tpu.memory_space<vmem>>, %arg7: memref<1x1xf32, #tpu.memory_space<vmem>>, %arg8: memref<128x1xf32, #tpu.memory_space<vmem>>) attributes {dimension_semantics = [#tpu.dimension_semantics<parallel>], iteration_bounds = array<i64: 4>, scalar_prefetch = 0 : i64, scratch_operands = 0 : i64, tpu.core_type = #tpu.core_type<tc>, window_params = [{transform_indices = @transform_0, window_bounds = array<i64: 128, 16>}, {pipeline_mode = #tpu.pipeline_mode<synchronous>, transform_indices = @transform_1, window_bounds = array<i64: 16, 128>}, {pipeline_mode = #tpu.pipeline_mode<synchronous>, transform_indices = @transform_2, window_bounds = array<i64: 1, 128>}, {pipeline_mode = #tpu.pipeline_mode<synchronous>, transform_indices = @transform_3, window_bounds = array<i64: 128, 128>}, {pipeline_mode = #tpu.pipeline_mode<synchronous>, transform_indices = @transform_4, window_bounds = array<i64: 1, 128>}, {pipeline_mode = #tpu.pipeline_mode<synchronous>, transform_indices = @transform_5, window_bounds = array<i64: 1, 128>}, {pipeline_mode = #tpu.pipeline_mode<synchronous>, transform_indices = @transform_6, window_bounds = array<i64: 1, 1>}, {transform_indices = @transform_7, window_bounds = array<i64: 128, 1>}]} {
    %c0 = arith.constant 0 : index
    %c0_0 = arith.constant 0 : index
    %0 = vector.load %arg1[%c0, %c0_0] : memref<128x16xf32, #tpu.memory_space<vmem>>, vector<128x16xf32>
    %1 = arith.truncf %0 : vector<128x16xf32> to vector<128x16xbf16>
    %c0_1 = arith.constant 0 : index
    %c0_2 = arith.constant 0 : index
    %2 = vector.load %arg2[%c0_1, %c0_2] : memref<16x128xbf16, #tpu.memory_space<vmem>>, vector<16x128xbf16>
    %cst = arith.constant dense<0.000000e+00> : vector<128x128xf32>
    %3 = tpu.matmul %1, %2, %cst {dimension_numbers = #tpu.dot_dimension_numbers<[1], [0], [0], [1], [0, 0, 1, 1], [], []>} : vector<128x16xbf16>, vector<16x128xbf16>, vector<128x128xf32> -> vector<128x128xf32>
    %c0_3 = arith.constant 0 : index
    %c0_4 = arith.constant 0 : index
    %4 = vector.load %arg3[%c0_3, %c0_4] : memref<1x128xf32, #tpu.memory_space<vmem>>, vector<1x128xf32>
    %5 = vector.broadcast %4 : vector<1x128xf32> to vector<128x128xf32>
    %6 = arith.addf %3, %5 : vector<128x128xf32>
    %7 = math.absf %6 : vector<128x128xf32>
    %cst_5 = arith.constant 0.000000e+00 : f32
    %8 = vector.broadcast %cst_5 : f32 to vector<128x128xf32>
    %9 = arith.subf %8, %7 : vector<128x128xf32>
    %10 = math.exp %9 : vector<128x128xf32>
    %11 = arith.mulf %10, %10 : vector<128x128xf32>
    %cst_6 = arith.constant 2.000000e+00 : f32
    %12 = vector.broadcast %cst_6 : f32 to vector<128x128xf32>
    %13 = arith.mulf %12, %10 : vector<128x128xf32>
    %cst_7 = arith.constant 0.000000e+00 : f32
    %14 = vector.broadcast %cst_7 : f32 to vector<128x128xf32>
    %15 = arith.cmpf oge, %6, %14 : vector<128x128xf32>
    %cst_8 = arith.constant 1.000000e+00 : f32
    %16 = vector.broadcast %cst_8 : f32 to vector<128x128xf32>
    %17 = arith.addf %16, %13 : vector<128x128xf32>
    %18 = arith.addf %11, %13 : vector<128x128xf32>
    %19 = arith.select %15, %17, %18 : vector<128x128xi1>, vector<128x128xf32>
    %cst_9 = arith.constant 0.000000e+00 : f32
    %20 = vector.broadcast %cst_9 : f32 to vector<128x128xf32>
    %21 = arith.cmpf oge, %6, %20 : vector<128x128xf32>
    %cst_10 = arith.constant 1.000000e+00 : f32
    %22 = vector.broadcast %cst_10 : f32 to vector<128x128xf32>
    %23 = arith.addf %22, %13 : vector<128x128xf32>
    %cst_11 = arith.constant 2.000000e+00 : f32
    %24 = vector.broadcast %cst_11 : f32 to vector<128x128xf32>
    %25 = arith.mulf %24, %11 : vector<128x128xf32>
    %26 = arith.addf %23, %25 : vector<128x128xf32>
    %27 = arith.addf %11, %13 : vector<128x128xf32>
    %cst_12 = arith.constant 2.000000e+00 : f32
    %28 = vector.broadcast %cst_12 : f32 to vector<128x128xf32>
    %29 = arith.addf %27, %28 : vector<128x128xf32>
    %30 = arith.select %21, %26, %29 : vector<128x128xi1>, vector<128x128xf32>
    %31 = arith.mulf %6, %19 : vector<128x128xf32>
    %32 = tpu.reciprocal %30 {approx = true} : vector<128x128xf32> -> vector<128x128xf32>
    %33 = arith.mulf %31, %32 : vector<128x128xf32>
    %34 = arith.truncf %33 : vector<128x128xf32> to vector<128x128xbf16>
    %c0_13 = arith.constant 0 : index
    %c0_14 = arith.constant 0 : index
    %35 = vector.load %arg4[%c0_13, %c0_14] : memref<128x128xbf16, #tpu.memory_space<vmem>>, vector<128x128xbf16>
    %cst_15 = arith.constant dense<0.000000e+00> : vector<128x128xf32>
    %36 = tpu.matmul %34, %35, %cst_15 {dimension_numbers = #tpu.dot_dimension_numbers<[1], [0], [0], [1], [0, 0, 1, 1], [], []>} : vector<128x128xbf16>, vector<128x128xbf16>, vector<128x128xf32> -> vector<128x128xf32>
    %c0_16 = arith.constant 0 : index
    %c0_17 = arith.constant 0 : index
    %37 = vector.load %arg5[%c0_16, %c0_17] : memref<1x128xf32, #tpu.memory_space<vmem>>, vector<1x128xf32>
    %38 = vector.broadcast %37 : vector<1x128xf32> to vector<128x128xf32>
    %39 = arith.addf %36, %38 : vector<128x128xf32>
    %40 = math.absf %39 : vector<128x128xf32>
    %cst_18 = arith.constant 0.000000e+00 : f32
    %41 = vector.broadcast %cst_18 : f32 to vector<128x128xf32>
    %42 = arith.subf %41, %40 : vector<128x128xf32>
    %43 = math.exp %42 : vector<128x128xf32>
    %44 = arith.mulf %43, %43 : vector<128x128xf32>
    %cst_19 = arith.constant 2.000000e+00 : f32
    %45 = vector.broadcast %cst_19 : f32 to vector<128x128xf32>
    %46 = arith.mulf %45, %43 : vector<128x128xf32>
    %cst_20 = arith.constant 0.000000e+00 : f32
    %47 = vector.broadcast %cst_20 : f32 to vector<128x128xf32>
    %48 = arith.cmpf oge, %39, %47 : vector<128x128xf32>
    %cst_21 = arith.constant 1.000000e+00 : f32
    %49 = vector.broadcast %cst_21 : f32 to vector<128x128xf32>
    %50 = arith.addf %49, %46 : vector<128x128xf32>
    %51 = arith.addf %44, %46 : vector<128x128xf32>
    %52 = arith.select %48, %50, %51 : vector<128x128xi1>, vector<128x128xf32>
    %cst_22 = arith.constant 0.000000e+00 : f32
    %53 = vector.broadcast %cst_22 : f32 to vector<128x128xf32>
    %54 = arith.cmpf oge, %39, %53 : vector<128x128xf32>
    %cst_23 = arith.constant 1.000000e+00 : f32
    %55 = vector.broadcast %cst_23 : f32 to vector<128x128xf32>
    %56 = arith.addf %55, %46 : vector<128x128xf32>
    %cst_24 = arith.constant 2.000000e+00 : f32
    %57 = vector.broadcast %cst_24 : f32 to vector<128x128xf32>
    %58 = arith.mulf %57, %44 : vector<128x128xf32>
    %59 = arith.addf %56, %58 : vector<128x128xf32>
    %60 = arith.addf %44, %46 : vector<128x128xf32>
    %cst_25 = arith.constant 2.000000e+00 : f32
    %61 = vector.broadcast %cst_25 : f32 to vector<128x128xf32>
    %62 = arith.addf %60, %61 : vector<128x128xf32>
    %63 = arith.select %54, %59, %62 : vector<128x128xi1>, vector<128x128xf32>
    %64 = arith.mulf %39, %52 : vector<128x128xf32>
    %65 = tpu.reciprocal %63 {approx = true} : vector<128x128xf32> -> vector<128x128xf32>
    %66 = arith.mulf %64, %65 : vector<128x128xf32>
    %c0_26 = arith.constant 0 : index
    %c0_27 = arith.constant 0 : index
    %67 = vector.load %arg6[%c0_26, %c0_27] : memref<1x128xf32, #tpu.memory_space<vmem>>, vector<1x128xf32>
    %68 = vector.broadcast %67 : vector<1x128xf32> to vector<128x128xf32>
    %69 = arith.mulf %66, %68 : vector<128x128xf32>
    %cst_28 = arith.constant dense<0.000000e+00> : vector<128xf32>
    %70 = vector.multi_reduction <add>, %69, %cst_28 [1] : vector<128x128xf32> to vector<128xf32>
    %71 = vector.shape_cast %70 : vector<128xf32> to vector<128x1xf32>
    %c0_29 = arith.constant 0 : index
    %c0_30 = arith.constant 0 : index
    %72 = vector.load %arg7[%c0_29, %c0_30] : memref<1x1xf32, #tpu.memory_space<vmem>>, vector<1x1xf32>
    %73 = vector.broadcast %72 : vector<1x1xf32> to vector<128x1xf32>
    %74 = arith.addf %71, %73 : vector<128x1xf32>
    %c0_31 = arith.constant 0 : index
    %c0_32 = arith.constant 0 : index
    %75 = vector.load %arg8[%c0_31, %c0_32] : memref<128x1xf32, #tpu.memory_space<vmem>>, vector<128x1xf32>
    tpu.vector_store %arg8[%c0_31, %c0_32], %74 {strides = array<i32>} : memref<128x1xf32, #tpu.memory_space<vmem>>, vector<128x1xf32>,
    return
  }
  func.func @transform_0(%arg0: i32) -> (i32, i32) {
    %c0_i32 = arith.constant 0 : i32
    %c0_i32_0 = arith.constant 0 : i32
    return %arg0, %c0_i32 : i32, i32
  }
  func.func @transform_1(%arg0: i32) -> (i32, i32) {
    %c0_i32 = arith.constant 0 : i32
    %c0_i32_0 = arith.constant 0 : i32
    %c0_i32_1 = arith.constant 0 : i32
    return %c0_i32, %c0_i32_0 : i32, i32
  }
  func.func @transform_2(%arg0: i32) -> (i32, i32) {
    %c0_i32 = arith.constant 0 : i32
    %c0_i32_0 = arith.constant 0 : i32
    %c0_i32_1 = arith.constant 0 : i32
    return %c0_i32, %c0_i32_0 : i32, i32
  }
  func.func @transform_3(%arg0: i32) -> (i32, i32) {
    %c0_i32 = arith.constant 0 : i32
    %c0_i32_0 = arith.constant 0 : i32
    %c0_i32_1 = arith.constant 0 : i32
    return %c0_i32, %c0_i32_0 : i32, i32
  }
  func.func @transform_4(%arg0: i32) -> (i32, i32) {
    %c0_i32 = arith.constant 0 : i32
    %c0_i32_0 = arith.constant 0 : i32
    %c0_i32_1 = arith.constant 0 : i32
    return %c0_i32, %c0_i32_0 : i32, i32
  }
  func.func @transform_5(%arg0: i32) -> (i32, i32) {
    %c0_i32 = arith.constant 0 : i32
    %c0_i32_0 = arith.constant 0 : i32
    %c0_i32_1 = arith.constant 0 : i32
    return %c0_i32, %c0_i32_0 : i32, i32
  }
  func.func @transform_6(%arg0: i32) -> (i32, i32) {
    %c0_i32 = arith.constant 0 : i32
    %c0_i32_0 = arith.constant 0 : i32
    %c0_i32_1 = arith.constant 0 : i32
    return %c0_i32, %c0_i32_0 : i32, i32
  }
  func.func @transform_7(%arg0: i32) -> (i32, i32) {
    %c0_i32 = arith.constant 0 : i32
    %c0_i32_0 = arith.constant 0 : i32
    return %arg0, %c0_i32 : i32, i32
  }
}

</mosaic_0001>

<llo_original>
// kernel: tpu_custom_call.1
$region0: #{tpu_custom_call.1}
  #allocation0 [shape = 'u32[]', space=smem, size = 0x4, offset = 0x4, fixed_abs, tag = 'smem constant byte address 0x4 - core index']
  #allocation1 [shape = 'u32[72,128]{1,0:T(1,128)}', space=vmem, size = 0x9000, scoped, tag = 'internal scratch']
  #allocation2 [shape = 'f32[1,1]{1,0:T(1,128)S(1)}', space=vmem, size = 0x200, scoped, tag = 'scoped memory for tpu_custom_call.1']
  %s0 = inlined_call_operand.vmem [shape: f32[512,16], index: 0, kind: input, shape index: {}]
  %s1 = inlined_call_operand.vmem [shape: bf16[16,128], index: 1, kind: input, shape index: {}]
  %s2 = inlined_call_operand.vmem [shape: f32[1,128], index: 2, kind: input, shape index: {}]
  %s3 = inlined_call_operand.vmem [shape: bf16[128,128], index: 3, kind: input, shape index: {}]
  %s4 = inlined_call_operand.vmem [shape: f32[1,128], index: 4, kind: input, shape index: {}]
  %s5 = inlined_call_operand.vmem [shape: f32[1,128], index: 5, kind: input, shape index: {}]
  %s6 = inlined_call_operand.<no memory space> [shape: f32[1,1], index: 6, kind: input, shape index: {}]
  %s7 = inlined_call_operand.vmem [shape: f32[512,1], index: 7, kind: output, shape index: {}]
  %s8 = sld [smem:[#allocation0]]
  $region61: #{tpu_custom_call.1} parent=0
    _
  %s10 = ssub.s32 1, %s8
  %s11 = scalar_select 0, %s10, %s8
  %v12 = vstv %s6
  %13 = vst [vmem:[#allocation2] sm:$0x1] %v12
  loop: start=0, step=1, limit=6
  $region2: #{tpu_custom_call.1} parent=0 // loop_pre_header
    _
  $region3: #{tpu_custom_call.1} parent=0 // loop_header
    %s15 = sphi 0, %s19
    %p16 = scmp.ge.s32.totalorder %s15, 6
    %s25 = sphi 0, %s27
    %s28 = sphi 0, %s25
    %s29 = sphi 0, %s28
    %s45 = sphi 0, %s29
    %s49 = sphi 0, %s49
    %s51 = sphi 0, %s49
    %s52 = sphi 0, %s51
    %s66 = sphi 0, %s52
    %s70 = sphi 0, %s70
    %s72 = sphi 0, %s70
    %s73 = sphi 0, %s72
    %s87 = sphi 0, %s73
    %s91 = sphi 0, %s91
    %s93 = sphi 0, %s91
    %s94 = sphi 0, %s93
    %s108 = sphi 0, %s94
    %s112 = sphi 0, %s112
    %s114 = sphi 0, %s112
    %s115 = sphi 0, %s114
    %s129 = sphi 0, %s115
    %s133 = sphi 0, %s133
    %s135 = sphi 0, %s133
    %s136 = sphi 0, %s135
    %s150 = sphi 0, %s136
    %s154 = sphi 0, %s154
    %s156 = sphi 0, %s154
    %s157 = sphi 0, %s156
    %s171 = sphi 0, %s157
    %s177 = sphi 0, %s179
    %s180 = sphi 0, %s177
    %s181 = sphi 0, %s180
    %s197 = sphi 0, %s181
  $region4: #{tpu_custom_call.1} parent=0 // loop_header_branch
    %18 = sbr.rel (%p16) target = $region8
  $region5: #{tpu_custom_call.1} parent=0 // loop_body
    %s20 = ssub.s32 %s15, 1
    %s21 = ssub.s32 %s15, 2
    %s22 = sadd.s32 %s15, 1
    %s23 = ssub.s32 %s15, %s22
    %p24 = scmp.eq.s32.totalorder %s23, 0
    %s26 = sadd.s32 %s25, 1
    %s27 = scalar_select %p24, %s25, %s26
    %p30 = pneg %p24
    %p31 = scmp.eq.s32.totalorder %s15, 3
    %p32 = por %p30, %p31
    %p33 = scmp.ne.s32.totalorder %s25, %s28
    %p34 = scmp.eq.s32.totalorder %s15, 0
    %p35 = por %p33, %p34
    %p36 = scmp.ne.s32.totalorder %s25, %s28
    %p37 = scmp.eq.s32.totalorder %s20, 3
    %p38 = por %p36, %p37
    %p39 = scmp.ne.s32.totalorder %s28, %s29
    %p40 = scmp.eq.s32.totalorder %s20, 0
    %p41 = por %p39, %p40
    %p42 = scmp.ne.s32.totalorder %s28, %s29
    %p43 = scmp.eq.s32.totalorder %s21, 3
    %p44 = por %p42, %p43
    %p46 = scmp.ne.s32.totalorder %s29, %s45
    %p47 = scmp.eq.s32.totalorder %s21, 0
    %p48 = por %p46, %p47
    %s50 = sadd.s32 %s49, 1
    %p53 = scmp.eq.s32.totalorder %s15, 3
    %p54 = scmp.ne.s32.totalorder %s49, %s51
    %p55 = scmp.eq.s32.totalorder %s15, 0
    %p56 = por %p54, %p55
    %p57 = scmp.ne.s32.totalorder %s49, %s51
    %p58 = scmp.eq.s32.totalorder %s20, 3
    %p59 = por %p57, %p58
    %p60 = scmp.ne.s32.totalorder %s51, %s52
    %p61 = scmp.eq.s32.totalorder %s20, 0
    %p62 = por %p60, %p61
    %p63 = scmp.ne.s32.totalorder %s51, %s52
    %p64 = scmp.eq.s32.totalorder %s21, 3
    %p65 = por %p63, %p64
    %p67 = scmp.ne.s32.totalorder %s52, %s66
    %p68 = scmp.eq.s32.totalorder %s21, 0
    %p69 = por %p67, %p68
    %s71 = sadd.s32 %s70, 1
    %p74 = scmp.eq.s32.totalorder %s15, 3
    %p75 = scmp.ne.s32.totalorder %s70, %s72
    %p76 = scmp.eq.s32.totalorder %s15, 0
    %p77 = por %p75, %p76
    %p78 = scmp.ne.s32.totalorder %s70, %s72
    %p79 = scmp.eq.s32.totalorder %s20, 3
    %p80 = por %p78, %p79
    %p81 = scmp.ne.s32.totalorder %s72, %s73
    %p82 = scmp.eq.s32.totalorder %s20, 0
    %p83 = por %p81, %p82
    %p84 = scmp.ne.s32.totalorder %s72, %s73
    %p85 = scmp.eq.s32.totalorder %s21, 3
    %p86 = por %p84, %p85
    %p88 = scmp.ne.s32.totalorder %s73, %s87
    %p89 = scmp.eq.s32.totalorder %s21, 0
    %p90 = por %p88, %p89
    %s92 = sadd.s32 %s91, 1
    %p95 = scmp.eq.s32.totalorder %s15, 3
    %p96 = scmp.ne.s32.totalorder %s91, %s93
    %p97 = scmp.eq.s32.totalorder %s15, 0
    %p98 = por %p96, %p97
    %p99 = scmp.ne.s32.totalorder %s91, %s93
    %p100 = scmp.eq.s32.totalorder %s20, 3
    %p101 = por %p99, %p100
    %p102 = scmp.ne.s32.totalorder %s93, %s94
    %p103 = scmp.eq.s32.totalorder %s20, 0
    %p104 = por %p102, %p103
    %p105 = scmp.ne.s32.totalorder %s93, %s94
    %p106 = scmp.eq.s32.totalorder %s21, 3
    %p107 = por %p105, %p106
    %p109 = scmp.ne.s32.totalorder %s94, %s108
    %p110 = scmp.eq.s32.totalorder %s21, 0
    %p111 = por %p109, %p110
    %s113 = sadd.s32 %s112, 1
    %p116 = scmp.eq.s32.totalorder %s15, 3
    %p117 = scmp.ne.s32.totalorder %s112, %s114
    %p118 = scmp.eq.s32.totalorder %s15, 0
    %p119 = por %p117, %p118
    %p120 = scmp.ne.s32.totalorder %s112, %s114
    %p121 = scmp.eq.s32.totalorder %s20, 3
    %p122 = por %p120, %p121
    %p123 = scmp.ne.s32.totalorder %s114, %s115
    %p124 = scmp.eq.s32.totalorder %s20, 0
    %p125 = por %p123, %p124
    %p126 = scmp.ne.s32.totalorder %s114, %s115
    %p127 = scmp.eq.s32.totalorder %s21, 3
    %p128 = por %p126, %p127
    %p130 = scmp.ne.s32.totalorder %s115, %s129
    %p131 = scmp.eq.s32.totalorder %s21, 0
    %p132 = por %p130, %p131
    %s134 = sadd.s32 %s133, 1
    %p137 = scmp.eq.s32.totalorder %s15, 3
    %p138 = scmp.ne.s32.totalorder %s133, %s135
    %p139 = scmp.eq.s32.totalorder %s15, 0
    %p140 = por %p138, %p139
    %p141 = scmp.ne.s32.totalorder %s133, %s135
    %p142 = scmp.eq.s32.totalorder %s20, 3
    %p143 = por %p141, %p142
    %p144 = scmp.ne.s32.totalorder %s135, %s136
    %p145 = scmp.eq.s32.totalorder %s20, 0
    %p146 = por %p144, %p145
    %p147 = scmp.ne.s32.totalorder %s135, %s136
    %p148 = scmp.eq.s32.totalorder %s21, 3
    %p149 = por %p147, %p148
    %p151 = scmp.ne.s32.totalorder %s136, %s150
    %p152 = scmp.eq.s32.totalorder %s21, 0
    %p153 = por %p151, %p152
    %s155 = sadd.s32 %s154, 1
    %p158 = scmp.eq.s32.totalorder %s15, 3
    %p159 = scmp.ne.s32.totalorder %s154, %s156
    %p160 = scmp.eq.s32.totalorder %s15, 0
    %p161 = por %p159, %p160
    %p162 = scmp.ne.s32.totalorder %s154, %s156
    %p163 = scmp.eq.s32.totalorder %s20, 3
    %p164 = por %p162, %p163
    %p165 = scmp.ne.s32.totalorder %s156, %s157
    %p166 = scmp.eq.s32.totalorder %s20, 0
    %p167 = por %p165, %p166
    %p168 = scmp.ne.s32.totalorder %s156, %s157
    %p169 = scmp.eq.s32.totalorder %s21, 3
    %p170 = por %p168, %p169
    %p172 = scmp.ne.s32.totalorder %s157, %s171
    %p173 = scmp.eq.s32.totalorder %s21, 0
    %p174 = por %p172, %p173
    %s175 = ssub.s32 %s15, %s22
    %p176 = scmp.eq.s32.totalorder %s175, 0
    %s178 = sadd.s32 %s177, 1
    %s179 = scalar_select %p176, %s177, %s178
    %p182 = pneg %p176
    %p183 = scmp.eq.s32.totalorder %s15, 3
    %p184 = por %p182, %p183
    %p185 = scmp.ne.s32.totalorder %s177, %s180
    %p186 = scmp.eq.s32.totalorder %s15, 0
    %p187 = por %p185, %p186
    %p188 = scmp.ne.s32.totalorder %s177, %s180
    %p189 = scmp.eq.s32.totalorder %s20, 3
    %p190 = por %p188, %p189
    %p191 = scmp.ne.s32.totalorder %s180, %s181
    %p192 = scmp.eq.s32.totalorder %s20, 0
    %p193 = por %p191, %p192
    %p194 = scmp.ne.s32.totalorder %s180, %s181
    %p195 = scmp.eq.s32.totalorder %s21, 3
    %p196 = por %p194, %p195
    %p198 = scmp.ne.s32.totalorder %s181, %s197
    %p199 = scmp.eq.s32.totalorder %s21, 0
    %p200 = por %p198, %p199
    %p201 = scmp.le.s32.totalorder 1, %s15
    %p202 = scmp.lt.s32.totalorder %s15, 5
    %p203 = pnand %p201, %p202
    %p204 = pneg %p203
    // Predicated region
    $region9: #{tpu_custom_call.1} parent=5 // pred_check
      _
    $region10: #{tpu_custom_call.1} parent=5 // pred_check_branch
      %206 = sbr.rel (%p203) target = $region12
    $region11: #{tpu_custom_call.1} parent=5 // pred_region
      %s207 = ssub.s32 %s15, 1
      // Predicated region
      $region13: #{tpu_custom_call.1} parent=11 // pred_check
        %p208 = pneg %p62
      $region14: #{tpu_custom_call.1} parent=11 // pred_check_branch
        %210 = sbr.rel (%p208) target = $region16
      $region15: #{tpu_custom_call.1} parent=11 // pred_region
        _
      $region16: #{tpu_custom_call.1} parent=11 // pred_fallthru
        _
      // Predicated region
      $region17: #{tpu_custom_call.1} parent=11 // pred_check
        %p211 = pneg %p83
      $region18: #{tpu_custom_call.1} parent=11 // pred_check_branch
        %213 = sbr.rel (%p211) target = $region20
      $region19: #{tpu_custom_call.1} parent=11 // pred_region
        _
      $region20: #{tpu_custom_call.1} parent=11 // pred_fallthru
        _
      // Predicated region
      $region21: #{tpu_custom_call.1} parent=11 // pred_check
        %p214 = pneg %p104
      $region22: #{tpu_custom_call.1} parent=11 // pred_check_branch
        %216 = sbr.rel (%p214) target = $region24
      $region23: #{tpu_custom_call.1} parent=11 // pred_region
        _
      $region24: #{tpu_custom_call.1} parent=11 // pred_fallthru
        _
      // Predicated region
      $region25: #{tpu_custom_call.1} parent=11 // pred_check
        %p217 = pneg %p125
      $region26: #{tpu_custom_call.1} parent=11 // pred_check_branch
        %219 = sbr.rel (%p217) target = $region28
      $region27: #{tpu_custom_call.1} parent=11 // pred_region
        _
      $region28: #{tpu_custom_call.1} parent=11 // pred_fallthru
        _
      // Predicated region
      $region29: #{tpu_custom_call.1} parent=11 // pred_check
        %p220 = pneg %p146
      $region30: #{tpu_custom_call.1} parent=11 // pred_check_branch
        %222 = sbr.rel (%p220) target = $region32
      $region31: #{tpu_custom_call.1} parent=11 // pred_region
        _
      $region32: #{tpu_custom_call.1} parent=11 // pred_fallthru
        _
      // Predicated region
      $region33: #{tpu_custom_call.1} parent=11 // pred_check
        %p223 = pneg %p167
      $region34: #{tpu_custom_call.1} parent=11 // pred_check_branch
        %225 = sbr.rel (%p223) target = $region36
      $region35: #{tpu_custom_call.1} parent=11 // pred_region
        _
      $region36: #{tpu_custom_call.1} parent=11 // pred_fallthru
        _
    $region12: #{tpu_custom_call.1} parent=5 // pred_fallthru
      _
    %p226 = scmp.lt.s32.totalorder %s15, 4
    // Predicated region
    $region37: #{tpu_custom_call.1} parent=5 // pred_check
      %p227 = pneg %p226
    $region38: #{tpu_custom_call.1} parent=5 // pred_check_branch
      %229 = sbr.rel (%p227) target = $region40
    $region39: #{tpu_custom_call.1} parent=5 // pred_region
      // Predicated region
      $region41: #{tpu_custom_call.1} parent=39 // pred_check
        %p230 = pneg %p35
      $region42: #{tpu_custom_call.1} parent=39 // pred_check_branch
        %232 = sbr.rel (%p230) target = $region44
      $region43: #{tpu_custom_call.1} parent=39 // pred_region
        %s233 = smul.u32 16, %s15
        %p234 = scmp.lt.s32.totalorder %s233, 63
        %s235 = scalar_select %p234, %s233, 63
        %s236 = smul.addr %s235, 8
        %s237 = scalar_lea.vmem %s0, %s236
        %s238 = smul.u32 16, %s15
      $region44: #{tpu_custom_call.1} parent=39 // pred_fallthru
        _
    $region40: #{tpu_custom_call.1} parent=5 // pred_fallthru
      _
    %p239 = scmp.le.s32.totalorder 1, %s15
    %p240 = scmp.lt.s32.totalorder %s15, 5
    %p241 = pnand %p239, %p240
    %p242 = pneg %p241
    // Predicated region
    $region45: #{tpu_custom_call.1} parent=5 // pred_check
      _
    $region46: #{tpu_custom_call.1} parent=5 // pred_check_branch
      %244 = sbr.rel (%p241) target = $region48
    $region47: #{tpu_custom_call.1} parent=5 // pred_region
      %s245 = ssub.s32 %s15, 1
      %s246 = smul.u32 16, %s20
      %p247 = scmp.lt.s32.totalorder %s246, 63
      %s248 = scalar_select %p247, %s246, 63
      %s249 = smul.addr %s248, 8
      %s250 = scalar_lea.vmem %s0, %s249
      %p251 = pneg %p41
      %p252 = pneg %p38
      %p253 = pneg %p62
      %p254 = pneg %p59
      %p255 = pneg %p83
      %p256 = pneg %p80
      %p257 = pneg %p104
      %p258 = pneg %p101
      %p259 = pneg %p125
      %p260 = pneg %p122
      %p261 = pneg %p146
      %p262 = pneg %p143
      %p263 = pneg %p167
      %p264 = pneg %p164
      %p265 = pneg %p193
      %p266 = pneg %p190
      %s267 = smul.u32 16, %s20
      %p268 = scmp.lt.s32.totalorder %s267, 63
      %s269 = scalar_select %p268, %s267, 63
      %s270 = smul.addr %s269, 8
      %s271 = scalar_lea.vmem %s7, %s270
      %s272 = smul.u32 16, %s20
      %p273 = scmp.lt.s32.totalorder %s272, 63
      %s274 = scalar_select %p273, %s272, 63
      %s275 = smul.addr %s274, 8
      %s276 = scalar_lea.vmem %s0, %s275
      %s277 = smul.u32 16, %s20
      %s278 = smul.u32 16, %s20
      %p279 = scmp.lt.s32.totalorder %s278, 63
      %s280 = scalar_select %p279, %s278, 63
      %s281 = smul.addr %s280, 8
      %s282 = scalar_lea.vmem %s7, %s281
      %s283 = smul.u32 16, %s20
      %v285 = vld [vmem:[%s276] sm:$0xff]
      %v286 = vld [vmem:[%s276 + $0x8] sm:$0xff]
      %v287 = vld [vmem:[%s276 + $0x10] sm:$0xff]
      %v288 = vld [vmem:[%s276 + $0x18] sm:$0xff]
      %v289 = vld [vmem:[%s276 + $0x20] sm:$0xff]
      %v290 = vld [vmem:[%s276 + $0x28] sm:$0xff]
      %v291 = vld [vmem:[%s276 + $0x30] sm:$0xff]
      %v292 = vld [vmem:[%s276 + $0x38] sm:$0xff]
      %v293 = vld [vmem:[%s276 + $0x40] sm:$0xff]
      %v294 = vld [vmem:[%s276 + $0x48] sm:$0xff]
      %v295 = vld [vmem:[%s276 + $0x50] sm:$0xff]
      %v296 = vld [vmem:[%s276 + $0x58] sm:$0xff]
      %v297 = vld [vmem:[%s276 + $0x60] sm:$0xff]
      %v298 = vld [vmem:[%s276 + $0x68] sm:$0xff]
      %v299 = vld [vmem:[%s276 + $0x70] sm:$0xff]
      %v300 = vld [vmem:[%s276 + $0x78] sm:$0xff]
      %v301 = vpack.c.bf16 %v286, %v285
      %v302 = vpack.c.bf16 %v288, %v287
      %v303 = vpack.c.bf16 %v290, %v289
      %v304 = vpack.c.bf16 %v292, %v291
      %v305 = vpack.c.bf16 %v294, %v293
      %v306 = vpack.c.bf16 %v296, %v295
      %v307 = vpack.c.bf16 %v298, %v297
      %v308 = vpack.c.bf16 %v300, %v299
      %v309 = vld [vmem:[%s1] sm:$0xf]
      %v310 = vld [vmem:[%s1 + $0x4] sm:$0xf]
      %v311 = vld [vmem:[%s2] sm:$0x1]
      %v313 = vperm.slane %v311, 0
      %v317 = vunpack.c.l.b16 %v309
      %v318 = vunpack.c.l.b16 %v310
      %v319 = vpack.c.b16 %v318, %v317
      %vm321 = vcmask 130048
      %v323 = vsel %vm321, %v301, 0
      %v326 = vsel %vm321, %v302, 0
      %v329 = vsel %vm321, %v303, 0
      %v332 = vsel %vm321, %v304, 0
      %v335 = vsel %vm321, %v305, 0
      %v338 = vsel %vm321, %v306, 0
      %v341 = vsel %vm321, %v307, 0
      %v344 = vsel %vm321, %v308, 0
      %346 = vmatpush.bf16.msra.mxu0 0
      %347 = vmatpush.bf16.msra.mxu0 0
      %348 = vmatpush.bf16.msra.mxu0 0
      %349 = vmatpush.bf16.msra.mxu0 0
      %350 = vmatpush.bf16.msra.mxu0 0
      %351 = vmatpush.bf16.msra.mxu0 0
      %352 = vmatpush.bf16.msra.mxu0 0
      %353 = vmatpush.bf16.msra.mxu0 %v319
      %354 = vmatmul.bf16.gmra.mxu0 %v323
      %v355 = vpop.f32.mrf.mxu0
      %v356 = vadd.f32 %v313, %v355
      %v357 = vpop.f32.mrf.mxu0
      %v358 = vadd.f32 %v313, %v357
      %359 = vmatmul.bf16.gmra.mxu0 %v326
      %v360 = vpop.f32.mrf.mxu0
      %v361 = vadd.f32 %v313, %v360
      %v362 = vpop.f32.mrf.mxu0
      %v363 = vadd.f32 %v313, %v362
      %364 = vmatmul.bf16.gmra.mxu0 %v329
      %v365 = vpop.f32.mrf.mxu0
      %v366 = vadd.f32 %v313, %v365
      %v367 = vpop.f32.mrf.mxu0
      %v368 = vadd.f32 %v313, %v367
      %369 = vmatmul.bf16.gmra.mxu0 %v332
      %v370 = vpop.f32.mrf.mxu0
      %v371 = vadd.f32 %v313, %v370
      %v372 = vpop.f32.mrf.mxu0
      %v373 = vadd.f32 %v313, %v372
      %374 = vmatmul.bf16.gmra.mxu0 %v335
      %v375 = vpop.f32.mrf.mxu0
      %v376 = vadd.f32 %v313, %v375
      %v377 = vpop.f32.mrf.mxu0
      %v378 = vadd.f32 %v313, %v377
      %379 = vmatmul.bf16.gmra.mxu0 %v338
      %v380 = vpop.f32.mrf.mxu0
      %v381 = vadd.f32 %v313, %v380
      %v382 = vpop.f32.mrf.mxu0
      %v383 = vadd.f32 %v313, %v382
      %384 = vmatmul.bf16.gmra.mxu0 %v341
      %v385 = vpop.f32.mrf.mxu0
      %v386 = vadd.f32 %v313, %v385
      %v387 = vpop.f32.mrf.mxu0
      %v388 = vadd.f32 %v313, %v387
      %389 = vmatmul.bf16.gmra.mxu0 %v344
      %v390 = vpop.f32.mrf.mxu0
      %v391 = vadd.f32 %v313, %v390
      %v392 = vpop.f32.mrf.mxu0
      %v393 = vadd.f32 %v313, %v392
      %394 = vdwg.mxu0
      %v395 = vand.u32 2147483647, %v356
      %v396 = vand.u32 2147483647, %v358
      %v397 = vand.u32 2147483647, %v361
      %v398 = vand.u32 2147483647, %v363
      %v399 = vand.u32 2147483647, %v366
      %v400 = vand.u32 2147483647, %v368
      %v401 = vand.u32 2147483647, %v371
      %v402 = vand.u32 2147483647, %v373
      %v403 = vand.u32 2147483647, %v376
      %v404 = vand.u32 2147483647, %v378
      %v405 = vand.u32 2147483647, %v381
      %v406 = vand.u32 2147483647, %v383
      %v407 = vand.u32 2147483647, %v386
      %v408 = vand.u32 2147483647, %v388
      %v409 = vand.u32 2147483647, %v391
      %v410 = vand.u32 2147483647, %v393
      %v411 = vsub.f32 0.0, %v395
      %v412 = vsub.f32 0.0, %v396
      %v413 = vsub.f32 0.0, %v397
      %v414 = vsub.f32 0.0, %v398
      %v415 = vsub.f32 0.0, %v399
      %v416 = vsub.f32 0.0, %v400
      %v417 = vsub.f32 0.0, %v401
      %v418 = vsub.f32 0.0, %v402
      %v419 = vsub.f32 0.0, %v403
      %v420 = vsub.f32 0.0, %v404
      %v421 = vsub.f32 0.0, %v405
      %v422 = vsub.f32 0.0, %v406
      %v423 = vsub.f32 0.0, %v407
      %v424 = vsub.f32 0.0, %v408
      %v425 = vsub.f32 0.0, %v409
      %v426 = vsub.f32 0.0, %v410
      %v427 = vmul.f32 %v411, 1.442695
      %v428 = vpow.pop %v427
      %v429 = vmul.f32 %v412, 1.442695
      %v430 = vpow.pop %v429
      %v431 = vmul.f32 %v413, 1.442695
      %v432 = vpow.pop %v431
      %v433 = vmul.f32 %v414, 1.442695
      %v434 = vpow.pop %v433
      %v435 = vmul.f32 %v415, 1.442695
      %v436 = vpow.pop %v435
      %v437 = vmul.f32 %v416, 1.442695
      %v438 = vpow.pop %v437
      %v439 = vmul.f32 %v417, 1.442695
      %v440 = vpow.pop %v439
      %v441 = vmul.f32 %v418, 1.442695
      %v442 = vpow.pop %v441
      %v443 = vmul.f32 %v419, 1.442695
      %v444 = vpow.pop %v443
      %v445 = vmul.f32 %v420, 1.442695
      %v446 = vpow.pop %v445
      %v447 = vmul.f32 %v421, 1.442695
      %v448 = vpow.pop %v447
      %v449 = vmul.f32 %v422, 1.442695
      %v450 = vpow.pop %v449
      %v451 = vmul.f32 %v423, 1.442695
      %v452 = vpow.pop %v451
      %v453 = vmul.f32 %v424, 1.442695
      %v454 = vpow.pop %v453
      %v455 = vmul.f32 %v425, 1.442695
      %v456 = vpow.pop %v455
      %v457 = vmul.f32 %v426, 1.442695
      %v458 = vpow.pop %v457
      %v459 = vmul.f32 %v428, %v428
      %v460 = vmul.f32 %v430, %v430
      %v461 = vmul.f32 %v432, %v432
      %v462 = vmul.f32 %v434, %v434
      %v463 = vmul.f32 %v436, %v436
      %v464 = vmul.f32 %v438, %v438
      %v465 = vmul.f32 %v440, %v440
      %v466 = vmul.f32 %v442, %v442
      %v467 = vmul.f32 %v444, %v444
      %v468 = vmul.f32 %v446, %v446
      %v469 = vmul.f32 %v448, %v448
      %v470 = vmul.f32 %v450, %v450
      %v471 = vmul.f32 %v452, %v452
      %v472 = vmul.f32 %v454, %v454
      %v473 = vmul.f32 %v456, %v456
      %v474 = vmul.f32 %v458, %v458
      %v475 = vmul.f32 %v428, 2.0
      %v476 = vmul.f32 %v430, 2.0
      %v477 = vmul.f32 %v432, 2.0
      %v478 = vmul.f32 %v434, 2.0
      %v479 = vmul.f32 %v436, 2.0
      %v480 = vmul.f32 %v438, 2.0
      %v481 = vmul.f32 %v440, 2.0
      %v482 = vmul.f32 %v442, 2.0
      %v483 = vmul.f32 %v444, 2.0
      %v484 = vmul.f32 %v446, 2.0
      %v485 = vmul.f32 %v448, 2.0
      %v486 = vmul.f32 %v450, 2.0
      %v487 = vmul.f32 %v452, 2.0
      %v488 = vmul.f32 %v454, 2.0
      %v489 = vmul.f32 %v456, 2.0
      %v490 = vmul.f32 %v458, 2.0
      %vm491 = vcmp.ge.f32.partialorder %v356, 0.0
      %vm492 = vcmp.ge.f32.partialorder %v358, 0.0
      %vm493 = vcmp.ge.f32.partialorder %v361, 0.0
      %vm494 = vcmp.ge.f32.partialorder %v363, 0.0
      %vm495 = vcmp.ge.f32.partialorder %v366, 0.0
      %vm496 = vcmp.ge.f32.partialorder %v368, 0.0
      %vm497 = vcmp.ge.f32.partialorder %v371, 0.0
      %vm498 = vcmp.ge.f32.partialorder %v373, 0.0
      %vm499 = vcmp.ge.f32.partialorder %v376, 0.0
      %vm500 = vcmp.ge.f32.partialorder %v378, 0.0
      %vm501 = vcmp.ge.f32.partialorder %v381, 0.0
      %vm502 = vcmp.ge.f32.partialorder %v383, 0.0
      %vm503 = vcmp.ge.f32.partialorder %v386, 0.0
      %vm504 = vcmp.ge.f32.partialorder %v388, 0.0
      %vm505 = vcmp.ge.f32.partialorder %v391, 0.0
      %vm506 = vcmp.ge.f32.partialorder %v393, 0.0
      %v507 = vadd.f32 %v475, 1.0
      %v508 = vadd.f32 %v476, 1.0
      %v509 = vadd.f32 %v477, 1.0
      %v510 = vadd.f32 %v478, 1.0
      %v511 = vadd.f32 %v479, 1.0
      %v512 = vadd.f32 %v480, 1.0
      %v513 = vadd.f32 %v481, 1.0
      %v514 = vadd.f32 %v482, 1.0
      %v515 = vadd.f32 %v483, 1.0
      %v516 = vadd.f32 %v484, 1.0
      %v517 = vadd.f32 %v485, 1.0
      %v518 = vadd.f32 %v486, 1.0
      %v519 = vadd.f32 %v487, 1.0
      %v520 = vadd.f32 %v488, 1.0
      %v521 = vadd.f32 %v489, 1.0
      %v522 = vadd.f32 %v490, 1.0
      %v523 = vadd.f32 %v459, %v475
      %v524 = vadd.f32 %v460, %v476
      %v525 = vadd.f32 %v461, %v477
      %v526 = vadd.f32 %v462, %v478
      %v527 = vadd.f32 %v463, %v479
      %v528 = vadd.f32 %v464, %v480
      %v529 = vadd.f32 %v465, %v481
      %v530 = vadd.f32 %v466, %v482
      %v531 = vadd.f32 %v467, %v483
      %v532 = vadd.f32 %v468, %v484
      %v533 = vadd.f32 %v469, %v485
      %v534 = vadd.f32 %v470, %v486
      %v535 = vadd.f32 %v471, %v487
      %v536 = vadd.f32 %v472, %v488
      %v537 = vadd.f32 %v473, %v489
      %v538 = vadd.f32 %v474, %v490
      %v539 = vsel %vm491, %v507, %v523
      %v540 = vsel %vm492, %v508, %v524
      %v541 = vsel %vm493, %v509, %v525
      %v542 = vsel %vm494, %v510, %v526
      %v543 = vsel %vm495, %v511, %v527
      %v544 = vsel %vm496, %v512, %v528
      %v545 = vsel %vm497, %v513, %v529
      %v546 = vsel %vm498, %v514, %v530
      %v547 = vsel %vm499, %v515, %v531
      %v548 = vsel %vm500, %v516, %v532
      %v549 = vsel %vm501, %v517, %v533
      %v550 = vsel %vm502, %v518, %v534
      %v551 = vsel %vm503, %v519, %v535
      %v552 = vsel %vm504, %v520, %v536
      %v553 = vsel %vm505, %v521, %v537
      %v554 = vsel %vm506, %v522, %v538
      %v555 = vmul.f32 %v459, 2.0
      %v556 = vmul.f32 %v460, 2.0
      %v557 = vmul.f32 %v461, 2.0
      %v558 = vmul.f32 %v462, 2.0
      %v559 = vmul.f32 %v463, 2.0
      %v560 = vmul.f32 %v464, 2.0
      %v561 = vmul.f32 %v465, 2.0
      %v562 = vmul.f32 %v466, 2.0
      %v563 = vmul.f32 %v467, 2.0
      %v564 = vmul.f32 %v468, 2.0
      %v565 = vmul.f32 %v469, 2.0
      %v566 = vmul.f32 %v470, 2.0
      %v567 = vmul.f32 %v471, 2.0
      %v568 = vmul.f32 %v472, 2.0
      %v569 = vmul.f32 %v473, 2.0
      %v570 = vmul.f32 %v474, 2.0
      %v571 = vadd.f32 %v507, %v555
      %v572 = vadd.f32 %v508, %v556
      %v573 = vadd.f32 %v509, %v557
      %v574 = vadd.f32 %v510, %v558
      %v575 = vadd.f32 %v511, %v559
      %v576 = vadd.f32 %v512, %v560
      %v577 = vadd.f32 %v513, %v561
      %v578 = vadd.f32 %v514, %v562
      %v579 = vadd.f32 %v515, %v563
      %v580 = vadd.f32 %v516, %v564
      %v581 = vadd.f32 %v517, %v565
      %v582 = vadd.f32 %v518, %v566
      %v583 = vadd.f32 %v519, %v567
      %v584 = vadd.f32 %v520, %v568
      %v585 = vadd.f32 %v521, %v569
      %v586 = vadd.f32 %v522, %v570
      %v587 = vadd.f32 %v523, 2.0
      %v588 = vadd.f32 %v524, 2.0
      %v589 = vadd.f32 %v525, 2.0
      %v590 = vadd.f32 %v526, 2.0
      %v591 = vadd.f32 %v527, 2.0
      %v592 = vadd.f32 %v528, 2.0
      %v593 = vadd.f32 %v529, 2.0
      %v594 = vadd.f32 %v530, 2.0
      %v595 = vadd.f32 %v531, 2.0
      %v596 = vadd.f32 %v532, 2.0
      %v597 = vadd.f32 %v533, 2.0
      %v598 = vadd.f32 %v534, 2.0
      %v599 = vadd.f32 %v535, 2.0
      %v600 = vadd.f32 %v536, 2.0
      %v601 = vadd.f32 %v537, 2.0
      %v602 = vadd.f32 %v538, 2.0
      %v603 = vsel %vm491, %v571, %v587
      %v604 = vsel %vm492, %v572, %v588
      %v605 = vsel %vm493, %v573, %v589
      %v606 = vsel %vm494, %v574, %v590
      %v607 = vsel %vm495, %v575, %v591
      %v608 = vsel %vm496, %v576, %v592
      %v609 = vsel %vm497, %v577, %v593
      %v610 = vsel %vm498, %v578, %v594
      %v611 = vsel %vm499, %v579, %v595
      %v612 = vsel %vm500, %v580, %v596
      %v613 = vsel %vm501, %v581, %v597
      %v614 = vsel %vm502, %v582, %v598
      %v615 = vsel %vm503, %v583, %v599
      %v616 = vsel %vm504, %v584, %v600
      %v617 = vsel %vm505, %v585, %v601
      %v618 = vsel %vm506, %v586, %v602
      %v619 = vmul.f32 %v356, %v539
      %v620 = vmul.f32 %v358, %v540
      %v621 = vmul.f32 %v361, %v541
      %v622 = vmul.f32 %v363, %v542
      %v623 = vmul.f32 %v366, %v543
      %v624 = vmul.f32 %v368, %v544
      %v625 = vmul.f32 %v371, %v545
      %v626 = vmul.f32 %v373, %v546
      %v627 = vmul.f32 %v376, %v547
      %v628 = vmul.f32 %v378, %v548
      %v629 = vmul.f32 %v381, %v549
      %v630 = vmul.f32 %v383, %v550
      %v631 = vmul.f32 %v386, %v551
      %v632 = vmul.f32 %v388, %v552
      %v633 = vmul.f32 %v391, %v553
      %v634 = vmul.f32 %v393, %v554
      %v635 = vrcp.pop %v603
      %v636 = vrcp.pop %v604
      %v637 = vrcp.pop %v605
      %v638 = vrcp.pop %v606
      %v639 = vrcp.pop %v607
      %v640 = vrcp.pop %v608
      %v641 = vrcp.pop %v609
      %v642 = vrcp.pop %v610
      %v643 = vrcp.pop %v611
      %v644 = vrcp.pop %v612
      %v645 = vrcp.pop %v613
      %v646 = vrcp.pop %v614
      %v647 = vrcp.pop %v615
      %v648 = vrcp.pop %v616
      %v649 = vrcp.pop %v617
      %v650 = vrcp.pop %v618
      %v651 = vmul.f32 %v619, %v635
      %v652 = vmul.f32 %v620, %v636
      %v653 = vmul.f32 %v621, %v637
      %v654 = vmul.f32 %v622, %v638
      %v655 = vmul.f32 %v623, %v639
      %v656 = vmul.f32 %v624, %v640
      %v657 = vmul.f32 %v625, %v641
      %v658 = vmul.f32 %v626, %v642
      %v659 = vmul.f32 %v627, %v643
      %v660 = vmul.f32 %v628, %v644
      %v661 = vmul.f32 %v629, %v645
      %v662 = vmul.f32 %v630, %v646
      %v663 = vmul.f32 %v631, %v647
      %v664 = vmul.f32 %v632, %v648
      %v665 = vmul.f32 %v633, %v649
      %v666 = vmul.f32 %v634, %v650
      %v667 = vpack.c.bf16 %v652, %v651
      %v668 = vpack.c.bf16 %v654, %v653
      %v669 = vpack.c.bf16 %v656, %v655
      %v670 = vpack.c.bf16 %v658, %v657
      %v671 = vpack.c.bf16 %v660, %v659
      %v672 = vpack.c.bf16 %v662, %v661
      %v673 = vpack.c.bf16 %v664, %v663
      %v674 = vpack.c.bf16 %v666, %v665
      %v675 = vld [vmem:[%s3] sm:$0xf]
      %v676 = vld [vmem:[%s3 + $0x4] sm:$0xf]
      %v677 = vld [vmem:[%s3 + $0x8] sm:$0xf]
      %v678 = vld [vmem:[%s3 + $0xc] sm:$0xf]
      %v679 = vld [vmem:[%s3 + $0x10] sm:$0xf]
      %v680 = vld [vmem:[%s3 + $0x14] sm:$0xf]
      %v681 = vld [vmem:[%s3 + $0x18] sm:$0xf]
      %v682 = vld [vmem:[%s3 + $0x1c] sm:$0xf]
      %v683 = vld [vmem:[%s3 + $0x20] sm:$0xf]
      %v684 = vld [vmem:[%s3 + $0x24] sm:$0xf]
      %v685 = vld [vmem:[%s3 + $0x28] sm:$0xf]
      %v686 = vld [vmem:[%s3 + $0x2c] sm:$0xf]
      %v687 = vld [vmem:[%s3 + $0x30] sm:$0xf]
      %v688 = vld [vmem:[%s3 + $0x34] sm:$0xf]
      %v689 = vld [vmem:[%s3 + $0x38] sm:$0xf]
      %v690 = vld [vmem:[%s3 + $0x3c] sm:$0xf]
      %v691 = vld [vmem:[%s4] sm:$0x1]
      %v693 = vperm.slane %v691, 0
      %v711 = vunpack.c.l.b16 %v675
      %v712 = vunpack.c.l.b16 %v676
      %v713 = vunpack.c.l.b16 %v677
      %v714 = vunpack.c.l.b16 %v678
      %v715 = vunpack.c.l.b16 %v679
      %v716 = vunpack.c.l.b16 %v680
      %v717 = vunpack.c.l.b16 %v681
      %v718 = vunpack.c.l.b16 %v682
      %v719 = vunpack.c.l.b16 %v683
      %v720 = vunpack.c.l.b16 %v684
      %v721 = vunpack.c.l.b16 %v685
      %v722 = vunpack.c.l.b16 %v686
      %v723 = vunpack.c.l.b16 %v687
      %v724 = vunpack.c.l.b16 %v688
      %v725 = vunpack.c.l.b16 %v689
      %v726 = vunpack.c.l.b16 %v690
      %v727 = vpack.c.b16 %v712, %v711
      %v728 = vpack.c.b16 %v714, %v713
      %v729 = vpack.c.b16 %v716, %v715
      %v730 = vpack.c.b16 %v718, %v717
      %v731 = vpack.c.b16 %v720, %v719
      %v732 = vpack.c.b16 %v722, %v721
      %v733 = vpack.c.b16 %v724, %v723
      %v734 = vpack.c.b16 %v726, %v725
      %743 = vmatpush.bf16.msra.mxu0 %v734
      %744 = vmatpush.bf16.msra.mxu0 %v733
      %745 = vmatpush.bf16.msra.mxu0 %v732
      %746 = vmatpush.bf16.msra.mxu0 %v731
      %747 = vmatpush.bf16.msra.mxu0 %v730
      %748 = vmatpush.bf16.msra.mxu0 %v729
      %749 = vmatpush.bf16.msra.mxu0 %v728
      %750 = vmatpush.bf16.msra.mxu0 %v727
      %751 = vmatmul.bf16.gmra.mxu0 %v667
      %v752 = vpop.f32.mrf.mxu0
      %v753 = vadd.f32 %v693, %v752
      %v754 = vpop.f32.mrf.mxu0
      %v755 = vadd.f32 %v693, %v754
      %756 = vmatmul.bf16.gmra.mxu0 %v668
      %v757 = vpop.f32.mrf.mxu0
      %v758 = vadd.f32 %v693, %v757
      %v759 = vpop.f32.mrf.mxu0
      %v760 = vadd.f32 %v693, %v759
      %761 = vmatmul.bf16.gmra.mxu0 %v669
      %v762 = vpop.f32.mrf.mxu0
      %v763 = vadd.f32 %v693, %v762
      %v764 = vpop.f32.mrf.mxu0
      %v765 = vadd.f32 %v693, %v764
      %766 = vmatmul.bf16.gmra.mxu0 %v670
      %v767 = vpop.f32.mrf.mxu0
      %v768 = vadd.f32 %v693, %v767
      %v769 = vpop.f32.mrf.mxu0
      %v770 = vadd.f32 %v693, %v769
      %771 = vmatmul.bf16.gmra.mxu0 %v671
      %v772 = vpop.f32.mrf.mxu0
      %v773 = vadd.f32 %v693, %v772
      %v774 = vpop.f32.mrf.mxu0
      %v775 = vadd.f32 %v693, %v774
      %776 = vmatmul.bf16.gmra.mxu0 %v672
      %v777 = vpop.f32.mrf.mxu0
      %v778 = vadd.f32 %v693, %v777
      %v779 = vpop.f32.mrf.mxu0
      %v780 = vadd.f32 %v693, %v779
      %781 = vmatmul.bf16.gmra.mxu0 %v673
      %v782 = vpop.f32.mrf.mxu0
      %v783 = vadd.f32 %v693, %v782
      %v784 = vpop.f32.mrf.mxu0
      %v785 = vadd.f32 %v693, %v784
      %786 = vmatmul.bf16.gmra.mxu0 %v674
      %v787 = vpop.f32.mrf.mxu0
      %v788 = vadd.f32 %v693, %v787
      %v789 = vpop.f32.mrf.mxu0
      %v790 = vadd.f32 %v693, %v789
      %791 = vdwg.mxu0
      %v792 = vand.u32 2147483647, %v753
      %v793 = vand.u32 2147483647, %v755
      %v794 = vand.u32 2147483647, %v758
      %v795 = vand.u32 2147483647, %v760
      %v796 = vand.u32 2147483647, %v763
      %v797 = vand.u32 2147483647, %v765
      %v798 = vand.u32 2147483647, %v768
      %v799 = vand.u32 2147483647, %v770
      %v800 = vand.u32 2147483647, %v773
      %v801 = vand.u32 2147483647, %v775
      %v802 = vand.u32 2147483647, %v778
      %v803 = vand.u32 2147483647, %v780
      %v804 = vand.u32 2147483647, %v783
      %v805 = vand.u32 2147483647, %v785
      %v806 = vand.u32 2147483647, %v788
      %v807 = vand.u32 2147483647, %v790
      %v808 = vsub.f32 0.0, %v792
      %v809 = vsub.f32 0.0, %v793
      %v810 = vsub.f32 0.0, %v794
      %v811 = vsub.f32 0.0, %v795
      %v812 = vsub.f32 0.0, %v796
      %v813 = vsub.f32 0.0, %v797
      %v814 = vsub.f32 0.0, %v798
      %v815 = vsub.f32 0.0, %v799
      %v816 = vsub.f32 0.0, %v800
      %v817 = vsub.f32 0.0, %v801
      %v818 = vsub.f32 0.0, %v802
      %v819 = vsub.f32 0.0, %v803
      %v820 = vsub.f32 0.0, %v804
      %v821 = vsub.f32 0.0, %v805
      %v822 = vsub.f32 0.0, %v806
      %v823 = vsub.f32 0.0, %v807
      %v824 = vmul.f32 %v808, 1.442695
      %v825 = vpow.pop %v824
      %v826 = vmul.f32 %v809, 1.442695
      %v827 = vpow.pop %v826
      %v828 = vmul.f32 %v810, 1.442695
      %v829 = vpow.pop %v828
      %v830 = vmul.f32 %v811, 1.442695
      %v831 = vpow.pop %v830
      %v832 = vmul.f32 %v812, 1.442695
      %v833 = vpow.pop %v832
      %v834 = vmul.f32 %v813, 1.442695
      %v835 = vpow.pop %v834
      %v836 = vmul.f32 %v814, 1.442695
      %v837 = vpow.pop %v836
      %v838 = vmul.f32 %v815, 1.442695
      %v839 = vpow.pop %v838
      %v840 = vmul.f32 %v816, 1.442695
      %v841 = vpow.pop %v840
      %v842 = vmul.f32 %v817, 1.442695
      %v843 = vpow.pop %v842
      %v844 = vmul.f32 %v818, 1.442695
      %v845 = vpow.pop %v844
      %v846 = vmul.f32 %v819, 1.442695
      %v847 = vpow.pop %v846
      %v848 = vmul.f32 %v820, 1.442695
      %v849 = vpow.pop %v848
      %v850 = vmul.f32 %v821, 1.442695
      %v851 = vpow.pop %v850
      %v852 = vmul.f32 %v822, 1.442695
      %v853 = vpow.pop %v852
      %v854 = vmul.f32 %v823, 1.442695
      %v855 = vpow.pop %v854
      %v856 = vmul.f32 %v825, %v825
      %v857 = vmul.f32 %v827, %v827
      %v858 = vmul.f32 %v829, %v829
      %v859 = vmul.f32 %v831, %v831
      %v860 = vmul.f32 %v833, %v833
      %v861 = vmul.f32 %v835, %v835
      %v862 = vmul.f32 %v837, %v837
      %v863 = vmul.f32 %v839, %v839
      %v864 = vmul.f32 %v841, %v841
      %v865 = vmul.f32 %v843, %v843
      %v866 = vmul.f32 %v845, %v845
      %v867 = vmul.f32 %v847, %v847
      %v868 = vmul.f32 %v849, %v849
      %v869 = vmul.f32 %v851, %v851
      %v870 = vmul.f32 %v853, %v853
      %v871 = vmul.f32 %v855, %v855
      %v872 = vmul.f32 %v825, 2.0
      %v873 = vmul.f32 %v827, 2.0
      %v874 = vmul.f32 %v829, 2.0
      %v875 = vmul.f32 %v831, 2.0
      %v876 = vmul.f32 %v833, 2.0
      %v877 = vmul.f32 %v835, 2.0
      %v878 = vmul.f32 %v837, 2.0
      %v879 = vmul.f32 %v839, 2.0
      %v880 = vmul.f32 %v841, 2.0
      %v881 = vmul.f32 %v843, 2.0
      %v882 = vmul.f32 %v845, 2.0
      %v883 = vmul.f32 %v847, 2.0
      %v884 = vmul.f32 %v849, 2.0
      %v885 = vmul.f32 %v851, 2.0
      %v886 = vmul.f32 %v853, 2.0
      %v887 = vmul.f32 %v855, 2.0
      %vm888 = vcmp.ge.f32.partialorder %v753, 0.0
      %vm889 = vcmp.ge.f32.partialorder %v755, 0.0
      %vm890 = vcmp.ge.f32.partialorder %v758, 0.0
      %vm891 = vcmp.ge.f32.partialorder %v760, 0.0
      %vm892 = vcmp.ge.f32.partialorder %v763, 0.0
      %vm893 = vcmp.ge.f32.partialorder %v765, 0.0
      %vm894 = vcmp.ge.f32.partialorder %v768, 0.0
      %vm895 = vcmp.ge.f32.partialorder %v770, 0.0
      %vm896 = vcmp.ge.f32.partialorder %v773, 0.0
      %vm897 = vcmp.ge.f32.partialorder %v775, 0.0
      %vm898 = vcmp.ge.f32.partialorder %v778, 0.0
      %vm899 = vcmp.ge.f32.partialorder %v780, 0.0
      %vm900 = vcmp.ge.f32.partialorder %v783, 0.0
      %vm901 = vcmp.ge.f32.partialorder %v785, 0.0
      %vm902 = vcmp.ge.f32.partialorder %v788, 0.0
      %vm903 = vcmp.ge.f32.partialorder %v790, 0.0
      %v904 = vadd.f32 %v872, 1.0
      %v905 = vadd.f32 %v873, 1.0
      %v906 = vadd.f32 %v874, 1.0
      %v907 = vadd.f32 %v875, 1.0
      %v908 = vadd.f32 %v876, 1.0
      %v909 = vadd.f32 %v877, 1.0
      %v910 = vadd.f32 %v878, 1.0
      %v911 = vadd.f32 %v879, 1.0
      %v912 = vadd.f32 %v880, 1.0
      %v913 = vadd.f32 %v881, 1.0
      %v914 = vadd.f32 %v882, 1.0
      %v915 = vadd.f32 %v883, 1.0
      %v916 = vadd.f32 %v884, 1.0
      %v917 = vadd.f32 %v885, 1.0
      %v918 = vadd.f32 %v886, 1.0
      %v919 = vadd.f32 %v887, 1.0
      %v920 = vadd.f32 %v856, %v872
      %v921 = vadd.f32 %v857, %v873
      %v922 = vadd.f32 %v858, %v874
      %v923 = vadd.f32 %v859, %v875
      %v924 = vadd.f32 %v860, %v876
      %v925 = vadd.f32 %v861, %v877
      %v926 = vadd.f32 %v862, %v878
      %v927 = vadd.f32 %v863, %v879
      %v928 = vadd.f32 %v864, %v880
      %v929 = vadd.f32 %v865, %v881
      %v930 = vadd.f32 %v866, %v882
      %v931 = vadd.f32 %v867, %v883
      %v932 = vadd.f32 %v868, %v884
      %v933 = vadd.f32 %v869, %v885
      %v934 = vadd.f32 %v870, %v886
      %v935 = vadd.f32 %v871, %v887
      %v936 = vsel %vm888, %v904, %v920
      %v937 = vsel %vm889, %v905, %v921
      %v938 = vsel %vm890, %v906, %v922
      %v939 = vsel %vm891, %v907, %v923
      %v940 = vsel %vm892, %v908, %v924
      %v941 = vsel %vm893, %v909, %v925
      %v942 = vsel %vm894, %v910, %v926
      %v943 = vsel %vm895, %v911, %v927
      %v944 = vsel %vm896, %v912, %v928
      %v945 = vsel %vm897, %v913, %v929
      %v946 = vsel %vm898, %v914, %v930
      %v947 = vsel %vm899, %v915, %v931
      %v948 = vsel %vm900, %v916, %v932
      %v949 = vsel %vm901, %v917, %v933
      %v950 = vsel %vm902, %v918, %v934
      %v951 = vsel %vm903, %v919, %v935
      %v952 = vmul.f32 %v856, 2.0
      %v953 = vmul.f32 %v857, 2.0
      %v954 = vmul.f32 %v858, 2.0
      %v955 = vmul.f32 %v859, 2.0
      %v956 = vmul.f32 %v860, 2.0
      %v957 = vmul.f32 %v861, 2.0
      %v958 = vmul.f32 %v862, 2.0
      %v959 = vmul.f32 %v863, 2.0
      %v960 = vmul.f32 %v864, 2.0
      %v961 = vmul.f32 %v865, 2.0
      %v962 = vmul.f32 %v866, 2.0
      %v963 = vmul.f32 %v867, 2.0
      %v964 = vmul.f32 %v868, 2.0
      %v965 = vmul.f32 %v869, 2.0
      %v966 = vmul.f32 %v870, 2.0
      %v967 = vmul.f32 %v871, 2.0
      %v968 = vadd.f32 %v904, %v952
      %v969 = vadd.f32 %v905, %v953
      %v970 = vadd.f32 %v906, %v954
      %v971 = vadd.f32 %v907, %v955
      %v972 = vadd.f32 %v908, %v956
      %v973 = vadd.f32 %v909, %v957
      %v974 = vadd.f32 %v910, %v958
      %v975 = vadd.f32 %v911, %v959
      %v976 = vadd.f32 %v912, %v960
      %v977 = vadd.f32 %v913, %v961
      %v978 = vadd.f32 %v914, %v962
      %v979 = vadd.f32 %v915, %v963
      %v980 = vadd.f32 %v916, %v964
      %v981 = vadd.f32 %v917, %v965
      %v982 = vadd.f32 %v918, %v966
      %v983 = vadd.f32 %v919, %v967
      %v984 = vadd.f32 %v920, 2.0
      %v985 = vadd.f32 %v921, 2.0
      %v986 = vadd.f32 %v922, 2.0
      %v987 = vadd.f32 %v923, 2.0
      %v988 = vadd.f32 %v924, 2.0
      %v989 = vadd.f32 %v925, 2.0
      %v990 = vadd.f32 %v926, 2.0
      %v991 = vadd.f32 %v927, 2.0
      %v992 = vadd.f32 %v928, 2.0
      %v993 = vadd.f32 %v929, 2.0
      %v994 = vadd.f32 %v930, 2.0
      %v995 = vadd.f32 %v931, 2.0
      %v996 = vadd.f32 %v932, 2.0
      %v997 = vadd.f32 %v933, 2.0
      %v998 = vadd.f32 %v934, 2.0
      %v999 = vadd.f32 %v935, 2.0
      %v1000 = vsel %vm888, %v968, %v984
      %v1001 = vsel %vm889, %v969, %v985
      %v1002 = vsel %vm890, %v970, %v986
      %v1003 = vsel %vm891, %v971, %v987
      %v1004 = vsel %vm892, %v972, %v988
      %v1005 = vsel %vm893, %v973, %v989
      %v1006 = vsel %vm894, %v974, %v990
      %v1007 = vsel %vm895, %v975, %v991
      %v1008 = vsel %vm896, %v976, %v992
      %v1009 = vsel %vm897, %v977, %v993
      %v1010 = vsel %vm898, %v978, %v994
      %v1011 = vsel %vm899, %v979, %v995
      %v1012 = vsel %vm900, %v980, %v996
      %v1013 = vsel %vm901, %v981, %v997
      %v1014 = vsel %vm902, %v982, %v998
      %v1015 = vsel %vm903, %v983, %v999
      %v1016 = vmul.f32 %v753, %v936
      %v1017 = vmul.f32 %v755, %v937
      %v1018 = vmul.f32 %v758, %v938
      %v1019 = vmul.f32 %v760, %v939
      %v1020 = vmul.f32 %v763, %v940
      %v1021 = vmul.f32 %v765, %v941
      %v1022 = vmul.f32 %v768, %v942
      %v1023 = vmul.f32 %v770, %v943
      %v1024 = vmul.f32 %v773, %v944
      %v1025 = vmul.f32 %v775, %v945
      %v1026 = vmul.f32 %v778, %v946
      %v1027 = vmul.f32 %v780, %v947
      %v1028 = vmul.f32 %v783, %v948
      %v1029 = vmul.f32 %v785, %v949
      %v1030 = vmul.f32 %v788, %v950
      %v1031 = vmul.f32 %v790, %v951
      %v1032 = vrcp.pop %v1000
      %v1033 = vrcp.pop %v1001
      %v1034 = vrcp.pop %v1002
      %v1035 = vrcp.pop %v1003
      %v1036 = vrcp.pop %v1004
      %v1037 = vrcp.pop %v1005
      %v1038 = vrcp.pop %v1006
      %v1039 = vrcp.pop %v1007
      %v1040 = vrcp.pop %v1008
      %v1041 = vrcp.pop %v1009
      %v1042 = vrcp.pop %v1010
      %v1043 = vrcp.pop %v1011
      %v1044 = vrcp.pop %v1012
      %v1045 = vrcp.pop %v1013
      %v1046 = vrcp.pop %v1014
      %v1047 = vrcp.pop %v1015
      %v1048 = vmul.f32 %v1016, %v1032
      %v1049 = vmul.f32 %v1017, %v1033
      %v1050 = vmul.f32 %v1018, %v1034
      %v1051 = vmul.f32 %v1019, %v1035
      %v1052 = vmul.f32 %v1020, %v1036
      %v1053 = vmul.f32 %v1021, %v1037
      %v1054 = vmul.f32 %v1022, %v1038
      %v1055 = vmul.f32 %v1023, %v1039
      %v1056 = vmul.f32 %v1024, %v1040
      %v1057 = vmul.f32 %v1025, %v1041
      %v1058 = vmul.f32 %v1026, %v1042
      %v1059 = vmul.f32 %v1027, %v1043
      %v1060 = vmul.f32 %v1028, %v1044
      %v1061 = vmul.f32 %v1029, %v1045
      %v1062 = vmul.f32 %v1030, %v1046
      %v1063 = vmul.f32 %v1031, %v1047
      %v1064 = vld [vmem:[%s5] sm:$0x1]
      %v1066 = vperm.slane %v1064, 0
      %v1068 = vmul.f32 %v1048, %v1066
      %v1069 = vmul.f32 %v1049, %v1066
      %v1070 = vmul.f32 %v1050, %v1066
      %v1071 = vmul.f32 %v1051, %v1066
      %v1072 = vmul.f32 %v1052, %v1066
      %v1073 = vmul.f32 %v1053, %v1066
      %v1074 = vmul.f32 %v1054, %v1066
      %v1075 = vmul.f32 %v1055, %v1066
      %v1076 = vmul.f32 %v1056, %v1066
      %v1077 = vmul.f32 %v1057, %v1066
      %v1078 = vmul.f32 %v1058, %v1066
      %v1079 = vmul.f32 %v1059, %v1066
      %v1080 = vmul.f32 %v1060, %v1066
      %v1081 = vmul.f32 %v1061, %v1066
      %v1082 = vmul.f32 %v1062, %v1066
      %v1083 = vmul.f32 %v1063, %v1066
      %1084 = vadd.xlane.f32.xlu0 %v1068
      %v1085 = vpop.xlane.xlu0 %1084
      %1086 = vadd.xlane.f32.xlu0 %v1069
      %v1087 = vpop.xlane.xlu0 %1086
      %1088 = vadd.xlane.f32.xlu0 %v1070
      %v1089 = vpop.xlane.xlu0 %1088
      %1090 = vadd.xlane.f32.xlu0 %v1071
      %v1091 = vpop.xlane.xlu0 %1090
      %1092 = vadd.xlane.f32.xlu0 %v1072
      %v1093 = vpop.xlane.xlu0 %1092
      %1094 = vadd.xlane.f32.xlu0 %v1073
      %v1095 = vpop.xlane.xlu0 %1094
      %1096 = vadd.xlane.f32.xlu0 %v1074
      %v1097 = vpop.xlane.xlu0 %1096
      %1098 = vadd.xlane.f32.xlu0 %v1075
      %v1099 = vpop.xlane.xlu0 %1098
      %1100 = vadd.xlane.f32.xlu0 %v1076
      %v1101 = vpop.xlane.xlu0 %1100
      %1102 = vadd.xlane.f32.xlu0 %v1077
      %v1103 = vpop.xlane.xlu0 %1102
      %1104 = vadd.xlane.f32.xlu0 %v1078
      %v1105 = vpop.xlane.xlu0 %1104
      %1106 = vadd.xlane.f32.xlu0 %v1079
      %v1107 = vpop.xlane.xlu0 %1106
      %1108 = vadd.xlane.f32.xlu0 %v1080
      %v1109 = vpop.xlane.xlu0 %1108
      %1110 = vadd.xlane.f32.xlu0 %v1081
      %v1111 = vpop.xlane.xlu0 %1110
      %1112 = vadd.xlane.f32.xlu0 %v1082
      %v1113 = vpop.xlane.xlu0 %1112
      %1114 = vadd.xlane.f32.xlu0 %v1083
      %v1115 = vpop.xlane.xlu0 %1114
      %v1116 = vld [vmem:[#allocation2] sm:$0x1]
      %v1118 = vperm.slane %v1116, 0
      %v1120 = vadd.f32 %v1085, %v1118
      %v1121 = vadd.f32 %v1087, %v1118
      %v1122 = vadd.f32 %v1089, %v1118
      %v1123 = vadd.f32 %v1091, %v1118
      %v1124 = vadd.f32 %v1093, %v1118
      %v1125 = vadd.f32 %v1095, %v1118
      %v1126 = vadd.f32 %v1097, %v1118
      %v1127 = vadd.f32 %v1099, %v1118
      %v1128 = vadd.f32 %v1101, %v1118
      %v1129 = vadd.f32 %v1103, %v1118
      %v1130 = vadd.f32 %v1105, %v1118
      %v1131 = vadd.f32 %v1107, %v1118
      %v1132 = vadd.f32 %v1109, %v1118
      %v1133 = vadd.f32 %v1111, %v1118
      %v1134 = vadd.f32 %v1113, %v1118
      %v1135 = vadd.f32 %v1115, %v1118
      %vm1136 = vcmask 7168
      %1137 = vst.msk [vmem:[%s282] sm:$0xff] %vm1136, %v1120
      %1138 = vst.msk [vmem:[%s282 + $0x8] sm:$0xff] %vm1136, %v1121
      %1139 = vst.msk [vmem:[%s282 + $0x10] sm:$0xff] %vm1136, %v1122
      %1140 = vst.msk [vmem:[%s282 + $0x18] sm:$0xff] %vm1136, %v1123
      %1141 = vst.msk [vmem:[%s282 + $0x20] sm:$0xff] %vm1136, %v1124
      %1142 = vst.msk [vmem:[%s282 + $0x28] sm:$0xff] %vm1136, %v1125
      %1143 = vst.msk [vmem:[%s282 + $0x30] sm:$0xff] %vm1136, %v1126
      %1144 = vst.msk [vmem:[%s282 + $0x38] sm:$0xff] %vm1136, %v1127
      %1145 = vst.msk [vmem:[%s282 + $0x40] sm:$0xff] %vm1136, %v1128
      %1146 = vst.msk [vmem:[%s282 + $0x48] sm:$0xff] %vm1136, %v1129
      %1147 = vst.msk [vmem:[%s282 + $0x50] sm:$0xff] %vm1136, %v1130
      %1148 = vst.msk [vmem:[%s282 + $0x58] sm:$0xff] %vm1136, %v1131
      %1149 = vst.msk [vmem:[%s282 + $0x60] sm:$0xff] %vm1136, %v1132
      %1150 = vst.msk [vmem:[%s282 + $0x68] sm:$0xff] %vm1136, %v1133
      %1151 = vst.msk [vmem:[%s282 + $0x70] sm:$0xff] %vm1136, %v1134
      %1152 = vst.msk [vmem:[%s282 + $0x78] sm:$0xff] %vm1136, %v1135
      %s1153 = smul.u32 16, %s20
      %p1154 = scmp.lt.s32.totalorder %s1153, 63
      %s1155 = scalar_select %p1154, %s1153, 63
      %s1156 = smul.addr %s1155, 8
      %s1157 = scalar_lea.vmem %s7, %s1156
      // Predicated region
      $region49: #{tpu_custom_call.1} parent=47 // pred_check
        %p1158 = pneg %p190
      $region50: #{tpu_custom_call.1} parent=47 // pred_check_branch
        %1160 = sbr.rel (%p1158) target = $region52
      $region51: #{tpu_custom_call.1} parent=47 // pred_region
        %s1161 = smul.u32 16, %s20
      $region52: #{tpu_custom_call.1} parent=47 // pred_fallthru
        _
    $region48: #{tpu_custom_call.1} parent=5 // pred_fallthru
      _
    %p1162 = scmp.le.s32.totalorder 2, %s15
    // Predicated region
    $region53: #{tpu_custom_call.1} parent=5 // pred_check
      %p1163 = pneg %p1162
    $region54: #{tpu_custom_call.1} parent=5 // pred_check_branch
      %1165 = sbr.rel (%p1163) target = $region56
    $region55: #{tpu_custom_call.1} parent=5 // pred_region
      %s1166 = ssub.s32 %s15, 2
      // Predicated region
      $region57: #{tpu_custom_call.1} parent=55 // pred_check
        %p1167 = pneg %p196
      $region58: #{tpu_custom_call.1} parent=55 // pred_check_branch
        %1169 = sbr.rel (%p1167) target = $region60
      $region59: #{tpu_custom_call.1} parent=55 // pred_region
        %s1170 = smul.u32 16, %s21
        %p1171 = scmp.lt.s32.totalorder %s1170, 63
        %s1172 = scalar_select %p1171, %s1170, 63
        %s1173 = smul.addr %s1172, 8
        %s1174 = scalar_lea.vmem %s7, %s1173
      $region60: #{tpu_custom_call.1} parent=55 // pred_fallthru
        _
    $region56: #{tpu_custom_call.1} parent=5 // pred_fallthru
      _
  $region6: #{tpu_custom_call.1} parent=0 // loop_footer
    %s19 = sadd.s32 1, %s15
  $region7: #{tpu_custom_call.1} parent=0 // loop_footer_branch
    %14 = sbr.rel target = $region3
  $region8: #{tpu_custom_call.1} parent=0 // loop_exit
    _

</llo_original>
